<compile_context>
chip_gen: v7x
topology: tpu7x:2x2x1
jax: 0.10.0
libtpu: 0.0.40
codegen_flags: <defaults>
</compile_context>

<pallas_src>
import functools

import jax
import jax.numpy as jnp
from jax.experimental import pallas as pl
from jax.experimental.pallas import tpu as pltpu

IN_FEATURES = 28 * 28   # 784
OUT_CLASSES = 10
LANE = 128


def _round_up(n, m):
    return ((n + m - 1) // m) * m


def _mlp_kernel(x_ref, w1_ref, b1_ref, w2_ref, b2_ref, w3_ref, b3_ref, o_ref):
    cd = w1_ref.dtype  # bf16 (or f32) MXU operand dtype
    # Layer 1: [tb, 784] @ [784, H1] on the MXU, f32 accumulation; bias+relu in f32.
    h1 = jnp.dot(x_ref[...], w1_ref[...], preferred_element_type=jnp.float32)
    h1 = jnp.maximum(h1 + b1_ref[...], 0.0)
    # Layer 2: [tb, H1] @ [H1, H2]
    h2 = jnp.dot(h1.astype(cd), w2_ref[...], preferred_element_type=jnp.float32)
    h2 = jnp.maximum(h2 + b2_ref[...], 0.0)
    # Layer 3: [tb, H2] @ [H2, C_pad]  (lane-dense, no activation)
    out = jnp.dot(h2.astype(cd), w3_ref[...], preferred_element_type=jnp.float32)
    o_ref[...] = (out + b3_ref[...]).astype(o_ref.dtype)


@functools.partial(jax.jit, static_argnames=("block_b", "compute_dtype"))
def densenet_fbm_forward(x, w1, b1, w2, b2, w3, b3, *, block_b=256,
                         compute_dtype=jnp.bfloat16):
    """Eval-mode forward of DenseNetFBM.

    x : [B, 784] float32 (row-major flatten of the 1x28x28 image)
    w1: [784, H1], b1: [1, H1]     (weights pre-transposed to [in, out])
    w2: [H1, H2],  b2: [1, H2]
    w3: [H2, 10],  b3: [1, 10]
    returns logits [B, 10] float32
    """
    B, D = x.shape
    H1 = w1.shape[1]
    H2 = w2.shape[1]
    C = w3.shape[1]
    assert D == IN_FEATURES and C == OUT_CLASSES

    # --- Lane-dense final layer: pad the 10-wide output / third layer to 128. ---
    C_pad = _round_up(C, LANE)
    w3p = jnp.pad(w3, ((0, 0), (0, C_pad - C)))
    b3p = jnp.pad(b3, ((0, 0), (0, C_pad - C)))

    # --- Batch tiling: big tiles; ragged B handled by zero-padding the batch. ---
    tb = min(block_b, _round_up(B, LANE))
    B_pad = _round_up(B, tb)
    if B_pad != B:
        x = jnp.pad(x, ((0, B_pad - B), (0, 0)))

    # --- bf16 MXU operands (f32 accumulation in-kernel); biases stay f32. ---
    xc = x.astype(compute_dtype)
    w1c = w1.astype(compute_dtype)
    w2c = w2.astype(compute_dtype)
    w3c = w3p.astype(compute_dtype)
    b1f = b1.astype(jnp.float32)
    b2f = b2.astype(jnp.float32)
    b3f = b3p.astype(jnp.float32)

    grid = (B_pad // tb,)

    flops = 2 * B_pad * (D * H1 + H1 * H2 + H2 * C_pad)
    bytes_accessed = (
        xc.size * xc.dtype.itemsize
        + w1c.size * w1c.dtype.itemsize
        + w2c.size * w2c.dtype.itemsize
        + w3c.size * w3c.dtype.itemsize
        + (b1f.size + b2f.size + b3f.size) * 4
        + B_pad * C_pad * 4)

    out = pl.pallas_call(
        _mlp_kernel,
        out_shape=jax.ShapeDtypeStruct((B_pad, C_pad), jnp.float32),
        grid_spec=pl.GridSpec(
            grid=grid,
            in_specs=[
                # activations: tiled over the batch
                pl.BlockSpec((tb, D), lambda i: (i, 0)),
                # weights / biases: full blocks, constant index_map -> resident
                # in VMEM across all batch tiles (no re-DMA per step)
                pl.BlockSpec((D, H1), lambda i: (0, 0)),
                pl.BlockSpec((1, H1), lambda i: (0, 0)),
                pl.BlockSpec((H1, H2), lambda i: (0, 0)),
                pl.BlockSpec((1, H2), lambda i: (0, 0)),
                pl.BlockSpec((H2, C_pad), lambda i: (0, 0)),
                pl.BlockSpec((1, C_pad), lambda i: (0, 0)),
            ],
            out_specs=pl.BlockSpec((tb, C_pad), lambda i: (i, 0)),
        ),
        compiler_params=pltpu.CompilerParams(
            dimension_semantics=("parallel",)),
        cost_estimate=pl.CostEstimate(
            flops=flops, transcendentals=0, bytes_accessed=bytes_accessed),
    )(xc, w1c, b1f, w2c, b2f, w3c, b3f)

    # Strip batch padding and the lane-padding of the class dimension.
    return out[:B, :C]


def init_linear(key, fan_in, fan_out, dtype=jnp.float32):
    """PyTorch-style init: U(-1/sqrt(fan_in), 1/sqrt(fan_in)); W is [in, out]."""
    kw, kb = jax.random.split(key)
    bound = 1.0 / jnp.sqrt(fan_in)
    w = jax.random.uniform(kw, (fan_in, fan_out), dtype, -bound, bound)
    b = jax.random.uniform(kb, (1, fan_out), dtype, -bound, bound)
    return w, b


def _ref_forward(x, w1, b1, w2, b2, w3, b3, compute_dtype=jnp.bfloat16):
    """Pure-JAX reference following the same precision path as the kernel."""
    cd = compute_dtype
    h = jnp.dot(x.astype(cd), w1.astype(cd), preferred_element_type=jnp.float32) + b1
    h = jnp.maximum(h, 0.0)
    h = jnp.dot(h.astype(cd), w2.astype(cd), preferred_element_type=jnp.float32) + b2
    h = jnp.maximum(h, 0.0)
    return jnp.dot(h.astype(cd), w3.astype(cd), preferred_element_type=jnp.float32) + b3


if __name__ == "__main__":
    HIDDEN_SIZES = (128, 128)

    root = jax.random.PRNGKey(0)
    kx, k1, k2, k3 = jax.random.split(root, 4)

    w1, b1 = init_linear(k1, IN_FEATURES, HIDDEN_SIZES[0])
    w2, b2 = init_linear(k2, HIDDEN_SIZES[0], HIDDEN_SIZES[1])
    w3, b3 = init_linear(k3, HIDDEN_SIZES[1], OUT_CLASSES)

    # Small batch (single grid step) + a ragged batch (multiple grid steps,
    # masked/padded final tile handled in the wrapper).
    for B in (8, 300):
        x = jax.random.normal(jax.random.fold_in(kx, B), (B, IN_FEATURES),
                              jnp.float32)
        logits = densenet_fbm_forward(x, w1, b1, w2, b2, w3, b3, block_b=256)
        logits = jax.block_until_ready(logits)
        assert logits.shape == (B, OUT_CLASSES)
        assert logits.dtype == jnp.float32

        # Reference with the same bf16-operand / f32-accumulate precision path.
        ref = _ref_forward(x, w1, b1, w2, b2, w3, b3)
        assert jnp.allclose(logits, ref, atol=2e-3, rtol=2e-3), float(
            jnp.max(jnp.abs(logits - ref)))

        # Sanity vs the pure-f32 eval path (bf16 matmuls add only small error).
        r = jnp.maximum(x @ w1 + b1, 0.0)
        r = jnp.maximum(r @ w2 + b2, 0.0)
        r = r @ w3 + b3
        assert float(jnp.max(jnp.abs(logits - r))) < 7.5e-2

    print("KERNEL_OK")
</pallas_src>

<mosaic_0001>
module attributes {stable_mosaic.version = 11 : i64} {
  func.func @_mlp_kernel(%arg0: i32, %arg1: memref<128x784xbf16, #tpu.memory_space<vmem>>, %arg2: memref<784x128xbf16, #tpu.memory_space<vmem>>, %arg3: memref<1x128xf32, #tpu.memory_space<vmem>>, %arg4: memref<128x128xbf16, #tpu.memory_space<vmem>>, %arg5: memref<1x128xf32, #tpu.memory_space<vmem>>, %arg6: memref<128x128xbf16, #tpu.memory_space<vmem>>, %arg7: memref<1x128xf32, #tpu.memory_space<vmem>>, %arg8: memref<128x128xf32, #tpu.memory_space<vmem>>) attributes {dimension_semantics = [#tpu.dimension_semantics<parallel>], iteration_bounds = array<i64: 1>, scalar_prefetch = 0 : i64, scratch_operands = 0 : i64, tpu.core_type = #tpu.core_type<tc>, window_params = [{transform_indices = @transform_0, window_bounds = array<i64: 128, 784>}, {pipeline_mode = #tpu.pipeline_mode<synchronous>, transform_indices = @transform_1, window_bounds = array<i64: 784, 128>}, {pipeline_mode = #tpu.pipeline_mode<synchronous>, transform_indices = @transform_2, window_bounds = array<i64: 1, 128>}, {pipeline_mode = #tpu.pipeline_mode<synchronous>, transform_indices = @transform_3, window_bounds = array<i64: 128, 128>}, {pipeline_mode = #tpu.pipeline_mode<synchronous>, transform_indices = @transform_4, window_bounds = array<i64: 1, 128>}, {pipeline_mode = #tpu.pipeline_mode<synchronous>, transform_indices = @transform_5, window_bounds = array<i64: 128, 128>}, {pipeline_mode = #tpu.pipeline_mode<synchronous>, transform_indices = @transform_6, window_bounds = array<i64: 1, 128>}, {transform_indices = @transform_7, window_bounds = array<i64: 128, 128>}]} {
    %c0 = arith.constant 0 : index
    %c0_0 = arith.constant 0 : index
    %0 = vector.load %arg1[%c0, %c0_0] : memref<128x784xbf16, #tpu.memory_space<vmem>>, vector<128x784xbf16>
    %c0_1 = arith.constant 0 : index
    %c0_2 = arith.constant 0 : index
    %1 = vector.load %arg2[%c0_1, %c0_2] : memref<784x128xbf16, #tpu.memory_space<vmem>>, vector<784x128xbf16>
    %cst = arith.constant dense<0.000000e+00> : vector<128x128xf32>
    %2 = tpu.matmul %0, %1, %cst {dimension_numbers = #tpu.dot_dimension_numbers<[1], [0], [0], [1], [0, 0, 1, 1], [], []>} : vector<128x784xbf16>, vector<784x128xbf16>, vector<128x128xf32> -> vector<128x128xf32>
    %c0_3 = arith.constant 0 : index
    %c0_4 = arith.constant 0 : index
    %3 = vector.load %arg3[%c0_3, %c0_4] : memref<1x128xf32, #tpu.memory_space<vmem>>, vector<1x128xf32>
    %4 = vector.broadcast %3 : vector<1x128xf32> to vector<128x128xf32>
    %5 = arith.addf %2, %4 : vector<128x128xf32>
    %cst_5 = arith.constant 0.000000e+00 : f32
    %6 = vector.broadcast %cst_5 : f32 to vector<128x128xf32>
    %7 = arith.maximumf %5, %6 : vector<128x128xf32>
    %8 = arith.truncf %7 : vector<128x128xf32> to vector<128x128xbf16>
    %c0_6 = arith.constant 0 : index
    %c0_7 = arith.constant 0 : index
    %9 = vector.load %arg4[%c0_6, %c0_7] : memref<128x128xbf16, #tpu.memory_space<vmem>>, vector<128x128xbf16>
    %cst_8 = arith.constant dense<0.000000e+00> : vector<128x128xf32>
    %10 = tpu.matmul %8, %9, %cst_8 {dimension_numbers = #tpu.dot_dimension_numbers<[1], [0], [0], [1], [0, 0, 1, 1], [], []>} : vector<128x128xbf16>, vector<128x128xbf16>, vector<128x128xf32> -> vector<128x128xf32>
    %c0_9 = arith.constant 0 : index
    %c0_10 = arith.constant 0 : index
    %11 = vector.load %arg5[%c0_9, %c0_10] : memref<1x128xf32, #tpu.memory_space<vmem>>, vector<1x128xf32>
    %12 = vector.broadcast %11 : vector<1x128xf32> to vector<128x128xf32>
    %13 = arith.addf %10, %12 : vector<128x128xf32>
    %cst_11 = arith.constant 0.000000e+00 : f32
    %14 = vector.broadcast %cst_11 : f32 to vector<128x128xf32>
    %15 = arith.maximumf %13, %14 : vector<128x128xf32>
    %16 = arith.truncf %15 : vector<128x128xf32> to vector<128x128xbf16>
    %c0_12 = arith.constant 0 : index
    %c0_13 = arith.constant 0 : index
    %17 = vector.load %arg6[%c0_12, %c0_13] : memref<128x128xbf16, #tpu.memory_space<vmem>>, vector<128x128xbf16>
    %cst_14 = arith.constant dense<0.000000e+00> : vector<128x128xf32>
    %18 = tpu.matmul %16, %17, %cst_14 {dimension_numbers = #tpu.dot_dimension_numbers<[1], [0], [0], [1], [0, 0, 1, 1], [], []>} : vector<128x128xbf16>, vector<128x128xbf16>, vector<128x128xf32> -> vector<128x128xf32>
    %c0_15 = arith.constant 0 : index
    %c0_16 = arith.constant 0 : index
    %19 = vector.load %arg7[%c0_15, %c0_16] : memref<1x128xf32, #tpu.memory_space<vmem>>, vector<1x128xf32>
    %20 = vector.broadcast %19 : vector<1x128xf32> to vector<128x128xf32>
    %21 = arith.addf %18, %20 : vector<128x128xf32>
    %c0_17 = arith.constant 0 : index
    %c0_18 = arith.constant 0 : index
    %22 = vector.load %arg8[%c0_17, %c0_18] : memref<128x128xf32, #tpu.memory_space<vmem>>, vector<128x128xf32>
    tpu.vector_store %arg8[%c0_17, %c0_18], %21 {strides = array<i32>} : memref<128x128xf32, #tpu.memory_space<vmem>>, vector<128x128xf32>,
    return
  }
  func.func @transform_0(%arg0: i32) -> (i32, i32) {
    %c0_i32 = arith.constant 0 : i32
    %c0_i32_0 = arith.constant 0 : i32
    return %arg0, %c0_i32 : i32, i32
  }
  func.func @transform_1(%arg0: i32) -> (i32, i32) {
    %c0_i32 = arith.constant 0 : i32
    %c0_i32_0 = arith.constant 0 : i32
    %c0_i32_1 = arith.constant 0 : i32
    return %c0_i32, %c0_i32_0 : i32, i32
  }
  func.func @transform_2(%arg0: i32) -> (i32, i32) {
    %c0_i32 = arith.constant 0 : i32
    %c0_i32_0 = arith.constant 0 : i32
    %c0_i32_1 = arith.constant 0 : i32
    return %c0_i32, %c0_i32_0 : i32, i32
  }
  func.func @transform_3(%arg0: i32) -> (i32, i32) {
    %c0_i32 = arith.constant 0 : i32
    %c0_i32_0 = arith.constant 0 : i32
    %c0_i32_1 = arith.constant 0 : i32
    return %c0_i32, %c0_i32_0 : i32, i32
  }
  func.func @transform_4(%arg0: i32) -> (i32, i32) {
    %c0_i32 = arith.constant 0 : i32
    %c0_i32_0 = arith.constant 0 : i32
    %c0_i32_1 = arith.constant 0 : i32
    return %c0_i32, %c0_i32_0 : i32, i32
  }
  func.func @transform_5(%arg0: i32) -> (i32, i32) {
    %c0_i32 = arith.constant 0 : i32
    %c0_i32_0 = arith.constant 0 : i32
    %c0_i32_1 = arith.constant 0 : i32
    return %c0_i32, %c0_i32_0 : i32, i32
  }
  func.func @transform_6(%arg0: i32) -> (i32, i32) {
    %c0_i32 = arith.constant 0 : i32
    %c0_i32_0 = arith.constant 0 : i32
    %c0_i32_1 = arith.constant 0 : i32
    return %c0_i32, %c0_i32_0 : i32, i32
  }
  func.func @transform_7(%arg0: i32) -> (i32, i32) {
    %c0_i32 = arith.constant 0 : i32
    %c0_i32_0 = arith.constant 0 : i32
    return %arg0, %c0_i32 : i32, i32
  }
}

</mosaic_0001>

<llo_original>
// kernel: densenet_fbm_forward.1
$region0: #{densenet_fbm_forward.1}
  #allocation0 [shape = 'u32[]', space=smem, size = 0x4, offset = 0x4, fixed_abs, tag = 'smem constant byte address 0x4 - core index']
  #allocation1 [shape = 'u32[144,128]{1,0:T(1,128)}', space=vmem, size = 0x12000, scoped, tag = 'internal scratch']
  %s0 = inlined_call_operand.vmem [shape: bf16[128,784], index: 0, kind: input, shape index: {}]
  %s1 = inlined_call_operand.vmem [shape: bf16[784,128], index: 1, kind: input, shape index: {}]
  %s2 = inlined_call_operand.vmem [shape: f32[1,128], index: 2, kind: input, shape index: {}]
  %s3 = inlined_call_operand.vmem [shape: bf16[128,128], index: 3, kind: input, shape index: {}]
  %s4 = inlined_call_operand.vmem [shape: f32[1,128], index: 4, kind: input, shape index: {}]
  %s5 = inlined_call_operand.vmem [shape: bf16[128,128], index: 5, kind: input, shape index: {}]
  %s6 = inlined_call_operand.vmem [shape: f32[1,128], index: 6, kind: input, shape index: {}]
  %s7 = inlined_call_operand.vmem [shape: f32[128,128], index: 7, kind: output, shape index: {}]
  %s8 = sld [smem:[#allocation0]]
  $region38: #{densenet_fbm_forward.1} parent=0
    _
  %s10 = ssub.s32 1, %s8
  %s11 = scalar_select 0, %s10, %s8
  // Predicated region
  $region2: #{densenet_fbm_forward.1} parent=0 // pred_check
    _
  $region3: #{densenet_fbm_forward.1} parent=0 // pred_check_branch
    %13 = sbr.rel (0) target = $region5
  $region4: #{densenet_fbm_forward.1} parent=0 // pred_region
    _
  $region5: #{densenet_fbm_forward.1} parent=0 // pred_fallthru
    _
  // Predicated region
  $region6: #{densenet_fbm_forward.1} parent=0 // pred_check
    _
  $region7: #{densenet_fbm_forward.1} parent=0 // pred_check_branch
    %15 = sbr.rel (0) target = $region9
  $region8: #{densenet_fbm_forward.1} parent=0 // pred_region
    _
  $region9: #{densenet_fbm_forward.1} parent=0 // pred_fallthru
    _
  // Predicated region
  $region10: #{densenet_fbm_forward.1} parent=0 // pred_check
    _
  $region11: #{densenet_fbm_forward.1} parent=0 // pred_check_branch
    %17 = sbr.rel (0) target = $region13
  $region12: #{densenet_fbm_forward.1} parent=0 // pred_region
    _
  $region13: #{densenet_fbm_forward.1} parent=0 // pred_fallthru
    _
  // Predicated region
  $region14: #{densenet_fbm_forward.1} parent=0 // pred_check
    _
  $region15: #{densenet_fbm_forward.1} parent=0 // pred_check_branch
    %19 = sbr.rel (0) target = $region17
  $region16: #{densenet_fbm_forward.1} parent=0 // pred_region
    _
  $region17: #{densenet_fbm_forward.1} parent=0 // pred_fallthru
    _
  // Predicated region
  $region18: #{densenet_fbm_forward.1} parent=0 // pred_check
    _
  $region19: #{densenet_fbm_forward.1} parent=0 // pred_check_branch
    %21 = sbr.rel (0) target = $region21
  $region20: #{densenet_fbm_forward.1} parent=0 // pred_region
    _
  $region21: #{densenet_fbm_forward.1} parent=0 // pred_fallthru
    _
  // Predicated region
  $region22: #{densenet_fbm_forward.1} parent=0 // pred_check
    _
  $region23: #{densenet_fbm_forward.1} parent=0 // pred_check_branch
    %23 = sbr.rel (0) target = $region25
  $region24: #{densenet_fbm_forward.1} parent=0 // pred_region
    _
  $region25: #{densenet_fbm_forward.1} parent=0 // pred_fallthru
    _
  // Predicated region
  $region26: #{densenet_fbm_forward.1} parent=0 // pred_check
    _
  $region27: #{densenet_fbm_forward.1} parent=0 // pred_check_branch
    %25 = sbr.rel (0) target = $region29
  $region28: #{densenet_fbm_forward.1} parent=0 // pred_region
    _
  $region29: #{densenet_fbm_forward.1} parent=0 // pred_fallthru
    _
  %v27 = vld [vmem:[%s0] sm:$0xff]
  %v28 = vld [vmem:[%s0 + $0x8] sm:$0xff]
  %v29 = vld [vmem:[%s0 + $0x10] sm:$0xff]
  %v30 = vld [vmem:[%s0 + $0x18] sm:$0xf]
  %v31 = vld [vmem:[%s0 + $0x1c] sm:$0xff]
  %v32 = vld [vmem:[%s0 + $0x24] sm:$0xff]
  %v33 = vld [vmem:[%s0 + $0x2c] sm:$0xff]
  %v34 = vld [vmem:[%s0 + $0x34] sm:$0xf]
  %v35 = vld [vmem:[%s0 + $0x38] sm:$0xff]
  %v36 = vld [vmem:[%s0 + $0x40] sm:$0xff]
  %v37 = vld [vmem:[%s0 + $0x48] sm:$0xff]
  %v38 = vld [vmem:[%s0 + $0x50] sm:$0xf]
  %v39 = vld [vmem:[%s0 + $0x54] sm:$0xff]
  %v40 = vld [vmem:[%s0 + $0x5c] sm:$0xff]
  %v41 = vld [vmem:[%s0 + $0x64] sm:$0xff]
  %v42 = vld [vmem:[%s0 + $0x6c] sm:$0xf]
  %v43 = vld [vmem:[%s0 + $0x70] sm:$0xff]
  %v44 = vld [vmem:[%s0 + $0x78] sm:$0xff]
  %v45 = vld [vmem:[%s0 + $0x80] sm:$0xff]
  %v46 = vld [vmem:[%s0 + $0x88] sm:$0xf]
  %v47 = vld [vmem:[%s0 + $0x8c] sm:$0xff]
  %v48 = vld [vmem:[%s0 + $0x94] sm:$0xff]
  %v49 = vld [vmem:[%s0 + $0x9c] sm:$0xff]
  %v50 = vld [vmem:[%s0 + $0xa4] sm:$0xf]
  %v51 = vld [vmem:[%s0 + $0xa8] sm:$0xff]
  %v52 = vld [vmem:[%s0 + $0xb0] sm:$0xff]
  %v53 = vld [vmem:[%s0 + $0xb8] sm:$0xff]
  %v54 = vld [vmem:[%s0 + $0xc0] sm:$0xf]
  %v55 = vld [vmem:[%s0 + $0xc4] sm:$0xff]
  %v56 = vld [vmem:[%s0 + $0xcc] sm:$0xff]
  %v57 = vld [vmem:[%s0 + $0xd4] sm:$0xff]
  %v58 = vld [vmem:[%s0 + $0xdc] sm:$0xf]
  %v59 = vld [vmem:[%s0 + $0xe0] sm:$0xff]
  %v60 = vld [vmem:[%s0 + $0xe8] sm:$0xff]
  %v61 = vld [vmem:[%s0 + $0xf0] sm:$0xff]
  %v62 = vld [vmem:[%s0 + $0xf8] sm:$0xf]
  %v63 = vld [vmem:[%s0 + $0xfc] sm:$0xff]
  %v64 = vld [vmem:[%s0 + $0x104] sm:$0xff]
  %v65 = vld [vmem:[%s0 + $0x10c] sm:$0xff]
  %v66 = vld [vmem:[%s0 + $0x114] sm:$0xf]
  %v67 = vld [vmem:[%s0 + $0x118] sm:$0xff]
  %v68 = vld [vmem:[%s0 + $0x120] sm:$0xff]
  %v69 = vld [vmem:[%s0 + $0x128] sm:$0xff]
  %v70 = vld [vmem:[%s0 + $0x130] sm:$0xf]
  %v71 = vld [vmem:[%s0 + $0x134] sm:$0xff]
  %v72 = vld [vmem:[%s0 + $0x13c] sm:$0xff]
  %v73 = vld [vmem:[%s0 + $0x144] sm:$0xff]
  %v74 = vld [vmem:[%s0 + $0x14c] sm:$0xf]
  %v75 = vld [vmem:[%s0 + $0x150] sm:$0xff]
  %v76 = vld [vmem:[%s0 + $0x158] sm:$0xff]
  %v77 = vld [vmem:[%s0 + $0x160] sm:$0xff]
  %v78 = vld [vmem:[%s0 + $0x168] sm:$0xf]
  %v79 = vld [vmem:[%s0 + $0x16c] sm:$0xff]
  %v80 = vld [vmem:[%s0 + $0x174] sm:$0xff]
  %v81 = vld [vmem:[%s0 + $0x17c] sm:$0xff]
  %v82 = vld [vmem:[%s0 + $0x184] sm:$0xf]
  %v83 = vld [vmem:[%s0 + $0x188] sm:$0xff]
  %v84 = vld [vmem:[%s0 + $0x190] sm:$0xff]
  %v85 = vld [vmem:[%s0 + $0x198] sm:$0xff]
  %v86 = vld [vmem:[%s0 + $0x1a0] sm:$0xf]
  %v87 = vld [vmem:[%s0 + $0x1a4] sm:$0xff]
  %v88 = vld [vmem:[%s0 + $0x1ac] sm:$0xff]
  %v89 = vld [vmem:[%s0 + $0x1b4] sm:$0xff]
  %v90 = vld [vmem:[%s0 + $0x1bc] sm:$0xf]
  %v91 = vld [vmem:[%s1] sm:$0xf]
  %v92 = vld [vmem:[%s1 + $0x4] sm:$0xf]
  %v93 = vld [vmem:[%s1 + $0x8] sm:$0xf]
  %v94 = vld [vmem:[%s1 + $0xc] sm:$0xf]
  %v95 = vld [vmem:[%s1 + $0x10] sm:$0xf]
  %v96 = vld [vmem:[%s1 + $0x14] sm:$0xf]
  %v97 = vld [vmem:[%s1 + $0x18] sm:$0xf]
  %v98 = vld [vmem:[%s1 + $0x1c] sm:$0xf]
  %v99 = vld [vmem:[%s1 + $0x20] sm:$0xf]
  %v100 = vld [vmem:[%s1 + $0x24] sm:$0xf]
  %v101 = vld [vmem:[%s1 + $0x28] sm:$0xf]
  %v102 = vld [vmem:[%s1 + $0x2c] sm:$0xf]
  %v103 = vld [vmem:[%s1 + $0x30] sm:$0xf]
  %v104 = vld [vmem:[%s1 + $0x34] sm:$0xf]
  %v105 = vld [vmem:[%s1 + $0x38] sm:$0xf]
  %v106 = vld [vmem:[%s1 + $0x3c] sm:$0xf]
  %v107 = vld [vmem:[%s1 + $0x40] sm:$0xf]
  %v108 = vld [vmem:[%s1 + $0x44] sm:$0xf]
  %v109 = vld [vmem:[%s1 + $0x48] sm:$0xf]
  %v110 = vld [vmem:[%s1 + $0x4c] sm:$0xf]
  %v111 = vld [vmem:[%s1 + $0x50] sm:$0xf]
  %v112 = vld [vmem:[%s1 + $0x54] sm:$0xf]
  %v113 = vld [vmem:[%s1 + $0x58] sm:$0xf]
  %v114 = vld [vmem:[%s1 + $0x5c] sm:$0xf]
  %v115 = vld [vmem:[%s1 + $0x60] sm:$0xf]
  %v116 = vld [vmem:[%s1 + $0x64] sm:$0xf]
  %v117 = vld [vmem:[%s1 + $0x68] sm:$0xf]
  %v118 = vld [vmem:[%s1 + $0x6c] sm:$0xf]
  %v119 = vld [vmem:[%s1 + $0x70] sm:$0xf]
  %v120 = vld [vmem:[%s1 + $0x74] sm:$0xf]
  %v121 = vld [vmem:[%s1 + $0x78] sm:$0xf]
  %v122 = vld [vmem:[%s1 + $0x7c] sm:$0xf]
  %v123 = vld [vmem:[%s1 + $0x80] sm:$0xf]
  %v124 = vld [vmem:[%s1 + $0x84] sm:$0xf]
  %v125 = vld [vmem:[%s1 + $0x88] sm:$0xf]
  %v126 = vld [vmem:[%s1 + $0x8c] sm:$0xf]
  %v127 = vld [vmem:[%s1 + $0x90] sm:$0xf]
  %v128 = vld [vmem:[%s1 + $0x94] sm:$0xf]
  %v129 = vld [vmem:[%s1 + $0x98] sm:$0xf]
  %v130 = vld [vmem:[%s1 + $0x9c] sm:$0xf]
  %v131 = vld [vmem:[%s1 + $0xa0] sm:$0xf]
  %v132 = vld [vmem:[%s1 + $0xa4] sm:$0xf]
  %v133 = vld [vmem:[%s1 + $0xa8] sm:$0xf]
  %v134 = vld [vmem:[%s1 + $0xac] sm:$0xf]
  %v135 = vld [vmem:[%s1 + $0xb0] sm:$0xf]
  %v136 = vld [vmem:[%s1 + $0xb4] sm:$0xf]
  %v137 = vld [vmem:[%s1 + $0xb8] sm:$0xf]
  %v138 = vld [vmem:[%s1 + $0xbc] sm:$0xf]
  %v139 = vld [vmem:[%s1 + $0xc0] sm:$0xf]
  %v140 = vld [vmem:[%s1 + $0xc4] sm:$0xf]
  %v141 = vld [vmem:[%s1 + $0xc8] sm:$0xf]
  %v142 = vld [vmem:[%s1 + $0xcc] sm:$0xf]
  %v143 = vld [vmem:[%s1 + $0xd0] sm:$0xf]
  %v144 = vld [vmem:[%s1 + $0xd4] sm:$0xf]
  %v145 = vld [vmem:[%s1 + $0xd8] sm:$0xf]
  %v146 = vld [vmem:[%s1 + $0xdc] sm:$0xf]
  %v147 = vld [vmem:[%s1 + $0xe0] sm:$0xf]
  %v148 = vld [vmem:[%s1 + $0xe4] sm:$0xf]
  %v149 = vld [vmem:[%s1 + $0xe8] sm:$0xf]
  %v150 = vld [vmem:[%s1 + $0xec] sm:$0xf]
  %v151 = vld [vmem:[%s1 + $0xf0] sm:$0xf]
  %v152 = vld [vmem:[%s1 + $0xf4] sm:$0xf]
  %v153 = vld [vmem:[%s1 + $0xf8] sm:$0xf]
  %v154 = vld [vmem:[%s1 + $0xfc] sm:$0xf]
  %v155 = vld [vmem:[%s1 + $0x100] sm:$0xf]
  %v156 = vld [vmem:[%s1 + $0x104] sm:$0xf]
  %v157 = vld [vmem:[%s1 + $0x108] sm:$0xf]
  %v158 = vld [vmem:[%s1 + $0x10c] sm:$0xf]
  %v159 = vld [vmem:[%s1 + $0x110] sm:$0xf]
  %v160 = vld [vmem:[%s1 + $0x114] sm:$0xf]
  %v161 = vld [vmem:[%s1 + $0x118] sm:$0xf]
  %v162 = vld [vmem:[%s1 + $0x11c] sm:$0xf]
  %v163 = vld [vmem:[%s1 + $0x120] sm:$0xf]
  %v164 = vld [vmem:[%s1 + $0x124] sm:$0xf]
  %v165 = vld [vmem:[%s1 + $0x128] sm:$0xf]
  %v166 = vld [vmem:[%s1 + $0x12c] sm:$0xf]
  %v167 = vld [vmem:[%s1 + $0x130] sm:$0xf]
  %v168 = vld [vmem:[%s1 + $0x134] sm:$0xf]
  %v169 = vld [vmem:[%s1 + $0x138] sm:$0xf]
  %v170 = vld [vmem:[%s1 + $0x13c] sm:$0xf]
  %v171 = vld [vmem:[%s1 + $0x140] sm:$0xf]
  %v172 = vld [vmem:[%s1 + $0x144] sm:$0xf]
  %v173 = vld [vmem:[%s1 + $0x148] sm:$0xf]
  %v174 = vld [vmem:[%s1 + $0x14c] sm:$0xf]
  %v175 = vld [vmem:[%s1 + $0x150] sm:$0xf]
  %v176 = vld [vmem:[%s1 + $0x154] sm:$0xf]
  %v177 = vld [vmem:[%s1 + $0x158] sm:$0xf]
  %v178 = vld [vmem:[%s1 + $0x15c] sm:$0xf]
  %v179 = vld [vmem:[%s1 + $0x160] sm:$0xf]
  %v180 = vld [vmem:[%s1 + $0x164] sm:$0xf]
  %v181 = vld [vmem:[%s1 + $0x168] sm:$0xf]
  %v182 = vld [vmem:[%s1 + $0x16c] sm:$0xf]
  %v183 = vld [vmem:[%s1 + $0x170] sm:$0xf]
  %v184 = vld [vmem:[%s1 + $0x174] sm:$0xf]
  %v185 = vld [vmem:[%s1 + $0x178] sm:$0xf]
  %v186 = vld [vmem:[%s1 + $0x17c] sm:$0xf]
  %v187 = vld [vmem:[%s1 + $0x180] sm:$0xf]
  %v188 = vld [vmem:[%s1 + $0x184] sm:$0xf]
  %v189 = vld [vmem:[%s2] sm:$0x1]
  %v191 = vlaneseq
  %v192 = vshrl.u32 %v191, 7
  %v193 = vsub.s32 0, %v192
  %v194 = vrot.slane %v189, %v193
  %v260 = vunpack.c.l.b16 %v27
  %v261 = vunpack.c.h.b16 %v27
  %v262 = vunpack.c.l.b16 %v28
  %v263 = vunpack.c.h.b16 %v28
  %v264 = vunpack.c.l.b16 %v29
  %v265 = vunpack.c.h.b16 %v29
  %v266 = vunpack.c.l.b16 %v30
  %v267 = vunpack.c.l.b16 %v31
  %v268 = vunpack.c.h.b16 %v31
  %v269 = vunpack.c.l.b16 %v32
  %v270 = vunpack.c.h.b16 %v32
  %v271 = vunpack.c.l.b16 %v33
  %v272 = vunpack.c.h.b16 %v33
  %v273 = vunpack.c.l.b16 %v34
  %v274 = vunpack.c.l.b16 %v35
  %v275 = vunpack.c.h.b16 %v35
  %v276 = vunpack.c.l.b16 %v36
  %v277 = vunpack.c.h.b16 %v36
  %v278 = vunpack.c.l.b16 %v37
  %v279 = vunpack.c.h.b16 %v37
  %v280 = vunpack.c.l.b16 %v38
  %v281 = vunpack.c.l.b16 %v39
  %v282 = vunpack.c.h.b16 %v39
  %v283 = vunpack.c.l.b16 %v40
  %v284 = vunpack.c.h.b16 %v40
  %v285 = vunpack.c.l.b16 %v41
  %v286 = vunpack.c.h.b16 %v41
  %v287 = vunpack.c.l.b16 %v42
  %v288 = vunpack.c.l.b16 %v43
  %v289 = vunpack.c.h.b16 %v43
  %v290 = vunpack.c.l.b16 %v44
  %v291 = vunpack.c.h.b16 %v44
  %v292 = vunpack.c.l.b16 %v45
  %v293 = vunpack.c.h.b16 %v45
  %v294 = vunpack.c.l.b16 %v46
  %v295 = vunpack.c.l.b16 %v47
  %v296 = vunpack.c.h.b16 %v47
  %v297 = vunpack.c.l.b16 %v48
  %v298 = vunpack.c.h.b16 %v48
  %v299 = vunpack.c.l.b16 %v49
  %v300 = vunpack.c.h.b16 %v49
  %v301 = vunpack.c.l.b16 %v50
  %v302 = vunpack.c.l.b16 %v51
  %v303 = vunpack.c.h.b16 %v51
  %v304 = vunpack.c.l.b16 %v52
  %v305 = vunpack.c.h.b16 %v52
  %v306 = vunpack.c.l.b16 %v53
  %v307 = vunpack.c.h.b16 %v53
  %v308 = vunpack.c.l.b16 %v54
  %v309 = vunpack.c.l.b16 %v55
  %v310 = vunpack.c.h.b16 %v55
  %v311 = vunpack.c.l.b16 %v56
  %v312 = vunpack.c.h.b16 %v56
  %v313 = vunpack.c.l.b16 %v57
  %v314 = vunpack.c.h.b16 %v57
  %v315 = vunpack.c.l.b16 %v58
  %v316 = vunpack.c.l.b16 %v59
  %v317 = vunpack.c.h.b16 %v59
  %v318 = vunpack.c.l.b16 %v60
  %v319 = vunpack.c.h.b16 %v60
  %v320 = vunpack.c.l.b16 %v61
  %v321 = vunpack.c.h.b16 %v61
  %v322 = vunpack.c.l.b16 %v62
  %v323 = vunpack.c.l.b16 %v63
  %v324 = vunpack.c.h.b16 %v63
  %v325 = vunpack.c.l.b16 %v64
  %v326 = vunpack.c.h.b16 %v64
  %v327 = vunpack.c.l.b16 %v65
  %v328 = vunpack.c.h.b16 %v65
  %v329 = vunpack.c.l.b16 %v66
  %v330 = vunpack.c.l.b16 %v67
  %v331 = vunpack.c.h.b16 %v67
  %v332 = vunpack.c.l.b16 %v68
  %v333 = vunpack.c.h.b16 %v68
  %v334 = vunpack.c.l.b16 %v69
  %v335 = vunpack.c.h.b16 %v69
  %v336 = vunpack.c.l.b16 %v70
  %v337 = vunpack.c.l.b16 %v71
  %v338 = vunpack.c.h.b16 %v71
  %v339 = vunpack.c.l.b16 %v72
  %v340 = vunpack.c.h.b16 %v72
  %v341 = vunpack.c.l.b16 %v73
  %v342 = vunpack.c.h.b16 %v73
  %v343 = vunpack.c.l.b16 %v74
  %v344 = vunpack.c.l.b16 %v75
  %v345 = vunpack.c.h.b16 %v75
  %v346 = vunpack.c.l.b16 %v76
  %v347 = vunpack.c.h.b16 %v76
  %v348 = vunpack.c.l.b16 %v77
  %v349 = vunpack.c.h.b16 %v77
  %v350 = vunpack.c.l.b16 %v78
  %v351 = vunpack.c.l.b16 %v79
  %v352 = vunpack.c.h.b16 %v79
  %v353 = vunpack.c.l.b16 %v80
  %v354 = vunpack.c.h.b16 %v80
  %v355 = vunpack.c.l.b16 %v81
  %v356 = vunpack.c.h.b16 %v81
  %v357 = vunpack.c.l.b16 %v82
  %v358 = vunpack.c.l.b16 %v83
  %v359 = vunpack.c.h.b16 %v83
  %v360 = vunpack.c.l.b16 %v84
  %v361 = vunpack.c.h.b16 %v84
  %v362 = vunpack.c.l.b16 %v85
  %v363 = vunpack.c.h.b16 %v85
  %v364 = vunpack.c.l.b16 %v86
  %v365 = vunpack.c.l.b16 %v87
  %v366 = vunpack.c.h.b16 %v87
  %v367 = vunpack.c.l.b16 %v88
  %v368 = vunpack.c.h.b16 %v88
  %v369 = vunpack.c.l.b16 %v89
  %v370 = vunpack.c.h.b16 %v89
  %v371 = vunpack.c.l.b16 %v90
  %v372 = vpack.c.b16 %v267, %v260
  %v373 = vpack.c.b16 %v268, %v261
  %v374 = vpack.c.b16 %v269, %v262
  %v375 = vpack.c.b16 %v270, %v263
  %v376 = vpack.c.b16 %v271, %v264
  %v377 = vpack.c.b16 %v272, %v265
  %v378 = vpack.c.b16 %v273, %v266
  %v379 = vpack.c.b16 %v281, %v274
  %v380 = vpack.c.b16 %v282, %v275
  %v381 = vpack.c.b16 %v283, %v276
  %v382 = vpack.c.b16 %v284, %v277
  %v383 = vpack.c.b16 %v285, %v278
  %v384 = vpack.c.b16 %v286, %v279
  %v385 = vpack.c.b16 %v287, %v280
  %v386 = vpack.c.b16 %v295, %v288
  %v387 = vpack.c.b16 %v296, %v289
  %v388 = vpack.c.b16 %v297, %v290
  %v389 = vpack.c.b16 %v298, %v291
  %v390 = vpack.c.b16 %v299, %v292
  %v391 = vpack.c.b16 %v300, %v293
  %v392 = vpack.c.b16 %v301, %v294
  %v393 = vpack.c.b16 %v309, %v302
  %v394 = vpack.c.b16 %v310, %v303
  %v395 = vpack.c.b16 %v311, %v304
  %v396 = vpack.c.b16 %v312, %v305
  %v397 = vpack.c.b16 %v313, %v306
  %v398 = vpack.c.b16 %v314, %v307
  %v399 = vpack.c.b16 %v315, %v308
  %v400 = vpack.c.b16 %v323, %v316
  %v401 = vpack.c.b16 %v324, %v317
  %v402 = vpack.c.b16 %v325, %v318
  %v403 = vpack.c.b16 %v326, %v319
  %v404 = vpack.c.b16 %v327, %v320
  %v405 = vpack.c.b16 %v328, %v321
  %v406 = vpack.c.b16 %v329, %v322
  %v407 = vpack.c.b16 %v337, %v330
  %v408 = vpack.c.b16 %v338, %v331
  %v409 = vpack.c.b16 %v339, %v332
  %v410 = vpack.c.b16 %v340, %v333
  %v411 = vpack.c.b16 %v341, %v334
  %v412 = vpack.c.b16 %v342, %v335
  %v413 = vpack.c.b16 %v343, %v336
  %v414 = vpack.c.b16 %v351, %v344
  %v415 = vpack.c.b16 %v352, %v345
  %v416 = vpack.c.b16 %v353, %v346
  %v417 = vpack.c.b16 %v354, %v347
  %v418 = vpack.c.b16 %v355, %v348
  %v419 = vpack.c.b16 %v356, %v349
  %v420 = vpack.c.b16 %v357, %v350
  %v421 = vpack.c.b16 %v365, %v358
  %v422 = vpack.c.b16 %v366, %v359
  %v423 = vpack.c.b16 %v367, %v360
  %v424 = vpack.c.b16 %v368, %v361
  %v425 = vpack.c.b16 %v369, %v362
  %v426 = vpack.c.b16 %v370, %v363
  %v427 = vpack.c.b16 %v371, %v364
  %v574 = vunpack.c.l.b16 %v91
  %v575 = vunpack.c.l.b16 %v92
  %v576 = vunpack.c.l.b16 %v93
  %v577 = vunpack.c.l.b16 %v94
  %v578 = vunpack.c.l.b16 %v95
  %v579 = vunpack.c.l.b16 %v96
  %v580 = vunpack.c.l.b16 %v97
  %v581 = vunpack.c.l.b16 %v98
  %v582 = vunpack.c.l.b16 %v99
  %v583 = vunpack.c.l.b16 %v100
  %v584 = vunpack.c.l.b16 %v101
  %v585 = vunpack.c.l.b16 %v102
  %v586 = vunpack.c.l.b16 %v103
  %v587 = vunpack.c.l.b16 %v104
  %v588 = vunpack.c.l.b16 %v105
  %v589 = vunpack.c.l.b16 %v106
  %v590 = vunpack.c.l.b16 %v107
  %v591 = vunpack.c.l.b16 %v108
  %v592 = vunpack.c.l.b16 %v109
  %v593 = vunpack.c.l.b16 %v110
  %v594 = vunpack.c.l.b16 %v111
  %v595 = vunpack.c.l.b16 %v112
  %v596 = vunpack.c.l.b16 %v113
  %v597 = vunpack.c.l.b16 %v114
  %v598 = vunpack.c.l.b16 %v115
  %v599 = vunpack.c.l.b16 %v116
  %v600 = vunpack.c.l.b16 %v117
  %v601 = vunpack.c.l.b16 %v118
  %v602 = vunpack.c.l.b16 %v119
  %v603 = vunpack.c.l.b16 %v120
  %v604 = vunpack.c.l.b16 %v121
  %v605 = vunpack.c.l.b16 %v122
  %v606 = vunpack.c.l.b16 %v123
  %v607 = vunpack.c.l.b16 %v124
  %v608 = vunpack.c.l.b16 %v125
  %v609 = vunpack.c.l.b16 %v126
  %v610 = vunpack.c.l.b16 %v127
  %v611 = vunpack.c.l.b16 %v128
  %v612 = vunpack.c.l.b16 %v129
  %v613 = vunpack.c.l.b16 %v130
  %v614 = vunpack.c.l.b16 %v131
  %v615 = vunpack.c.l.b16 %v132
  %v616 = vunpack.c.l.b16 %v133
  %v617 = vunpack.c.l.b16 %v134
  %v618 = vunpack.c.l.b16 %v135
  %v619 = vunpack.c.l.b16 %v136
  %v620 = vunpack.c.l.b16 %v137
  %v621 = vunpack.c.l.b16 %v138
  %v622 = vunpack.c.l.b16 %v139
  %v623 = vunpack.c.l.b16 %v140
  %v624 = vunpack.c.l.b16 %v141
  %v625 = vunpack.c.l.b16 %v142
  %v626 = vunpack.c.l.b16 %v143
  %v627 = vunpack.c.l.b16 %v144
  %v628 = vunpack.c.l.b16 %v145
  %v629 = vunpack.c.l.b16 %v146
  %v630 = vunpack.c.l.b16 %v147
  %v631 = vunpack.c.l.b16 %v148
  %v632 = vunpack.c.l.b16 %v149
  %v633 = vunpack.c.l.b16 %v150
  %v634 = vunpack.c.l.b16 %v151
  %v635 = vunpack.c.l.b16 %v152
  %v636 = vunpack.c.l.b16 %v153
  %v637 = vunpack.c.l.b16 %v154
  %v638 = vunpack.c.l.b16 %v155
  %v639 = vunpack.c.l.b16 %v156
  %v640 = vunpack.c.l.b16 %v157
  %v641 = vunpack.c.l.b16 %v158
  %v642 = vunpack.c.l.b16 %v159
  %v643 = vunpack.c.l.b16 %v160
  %v644 = vunpack.c.l.b16 %v161
  %v645 = vunpack.c.l.b16 %v162
  %v646 = vunpack.c.l.b16 %v163
  %v647 = vunpack.c.l.b16 %v164
  %v648 = vunpack.c.l.b16 %v165
  %v649 = vunpack.c.l.b16 %v166
  %v650 = vunpack.c.l.b16 %v167
  %v651 = vunpack.c.l.b16 %v168
  %v652 = vunpack.c.l.b16 %v169
  %v653 = vunpack.c.l.b16 %v170
  %v654 = vunpack.c.l.b16 %v171
  %v655 = vunpack.c.l.b16 %v172
  %v656 = vunpack.c.l.b16 %v173
  %v657 = vunpack.c.l.b16 %v174
  %v658 = vunpack.c.l.b16 %v175
  %v659 = vunpack.c.l.b16 %v176
  %v660 = vunpack.c.l.b16 %v177
  %v661 = vunpack.c.l.b16 %v178
  %v662 = vunpack.c.l.b16 %v179
  %v663 = vunpack.c.l.b16 %v180
  %v664 = vunpack.c.l.b16 %v181
  %v665 = vunpack.c.l.b16 %v182
  %v666 = vunpack.c.l.b16 %v183
  %v667 = vunpack.c.l.b16 %v184
  %v668 = vunpack.c.l.b16 %v185
  %v669 = vunpack.c.l.b16 %v186
  %v670 = vunpack.c.l.b16 %v187
  %v671 = vunpack.c.l.b16 %v188
  %v672 = vpack.c.b16 %v575, %v574
  %v673 = vpack.c.b16 %v577, %v576
  %v674 = vpack.c.b16 %v579, %v578
  %v675 = vpack.c.b16 %v581, %v580
  %v676 = vpack.c.b16 %v583, %v582
  %v677 = vpack.c.b16 %v585, %v584
  %v678 = vpack.c.b16 %v587, %v586
  %v679 = vpack.c.b16 %v589, %v588
  %v680 = vpack.c.b16 %v591, %v590
  %v681 = vpack.c.b16 %v593, %v592
  %v682 = vpack.c.b16 %v595, %v594
  %v683 = vpack.c.b16 %v597, %v596
  %v684 = vpack.c.b16 %v599, %v598
  %v685 = vpack.c.b16 %v601, %v600
  %v686 = vpack.c.b16 %v603, %v602
  %v687 = vpack.c.b16 %v605, %v604
  %v688 = vpack.c.b16 %v607, %v606
  %v689 = vpack.c.b16 %v609, %v608
  %v690 = vpack.c.b16 %v611, %v610
  %v691 = vpack.c.b16 %v613, %v612
  %v692 = vpack.c.b16 %v615, %v614
  %v693 = vpack.c.b16 %v617, %v616
  %v694 = vpack.c.b16 %v619, %v618
  %v695 = vpack.c.b16 %v621, %v620
  %v696 = vpack.c.b16 %v623, %v622
  %v697 = vpack.c.b16 %v625, %v624
  %v698 = vpack.c.b16 %v627, %v626
  %v699 = vpack.c.b16 %v629, %v628
  %v700 = vpack.c.b16 %v631, %v630
  %v701 = vpack.c.b16 %v633, %v632
  %v702 = vpack.c.b16 %v635, %v634
  %v703 = vpack.c.b16 %v637, %v636
  %v704 = vpack.c.b16 %v639, %v638
  %v705 = vpack.c.b16 %v641, %v640
  %v706 = vpack.c.b16 %v643, %v642
  %v707 = vpack.c.b16 %v645, %v644
  %v708 = vpack.c.b16 %v647, %v646
  %v709 = vpack.c.b16 %v649, %v648
  %v710 = vpack.c.b16 %v651, %v650
  %v711 = vpack.c.b16 %v653, %v652
  %v712 = vpack.c.b16 %v655, %v654
  %v713 = vpack.c.b16 %v657, %v656
  %v714 = vpack.c.b16 %v659, %v658
  %v715 = vpack.c.b16 %v661, %v660
  %v716 = vpack.c.b16 %v663, %v662
  %v717 = vpack.c.b16 %v665, %v664
  %v718 = vpack.c.b16 %v667, %v666
  %v719 = vpack.c.b16 %v669, %v668
  %v720 = vpack.c.b16 %v671, %v670
  %vm770 = vcmask 130048
  %v772 = vsel %vm770, %v378, 0
  %v775 = vsel %vm770, %v385, 0
  %v778 = vsel %vm770, %v392, 0
  %v781 = vsel %vm770, %v399, 0
  %v784 = vsel %vm770, %v406, 0
  %v787 = vsel %vm770, %v413, 0
  %v790 = vsel %vm770, %v420, 0
  %v793 = vsel %vm770, %v427, 0
  %795 = vmatprep.subr.bf16.mxu0 0
  %796 = vmatpush1.bf16.msra.mxu0 %v672
  %797 = vmatprep.subr.bf16.mxu0 0
  %798 = vmatpush1.bf16.msra.mxu0 %v673
  %799 = vmatprep.subr.bf16.mxu0 0
  %800 = vmatpush1.bf16.msra.mxu0 %v674
  %801 = vmatprep.subr.bf16.mxu0 0
  %802 = vmatpush1.bf16.msra.mxu0 %v675
  %803 = vmatprep.subr.bf16.mxu0 0
  %804 = vmatpush1.bf16.msra.mxu0 %v676
  %805 = vmatprep.subr.bf16.mxu0 0
  %806 = vmatpush1.bf16.msra.mxu0 %v677
  %807 = vmatprep.subr.bf16.mxu0 0
  %808 = vmatpush1.bf16.msra.mxu0 %v678
  %809 = vmatprep.subr.bf16.mxu0 0
  %810 = vmatpush1.bf16.msra.mxu0 %v679
  %811 = vmatprep.subr.bf16.mxu0 0
  %812 = vmatpush1.bf16.msra.mxu0 %v680
  %813 = vmatprep.subr.bf16.mxu0 0
  %814 = vmatpush1.bf16.msra.mxu0 %v681
  %815 = vmatprep.subr.bf16.mxu0 0
  %816 = vmatpush1.bf16.msra.mxu0 %v682
  %817 = vmatprep.subr.bf16.mxu0 0
  %818 = vmatpush1.bf16.msra.mxu0 %v683
  %819 = vmatprep.subr.bf16.mxu0 0
  %820 = vmatpush1.bf16.msra.mxu0 %v684
  %821 = vmatprep.subr.bf16.mxu0 0
  %822 = vmatpush1.bf16.msra.mxu0 %v685
  %823 = vmatprep.subr.bf16.mxu0 0
  %824 = vmatpush1.bf16.msra.mxu0 %v686
  %825 = vmatprep.subr.bf16.mxu0 0
  %826 = vmatpush1.bf16.msra.mxu0 %v687
  %827 = vmatprep.mubr.bf16.mxu0 %v373
  %828 = vmatmul.mubr.bf16.gmra.mrb[0].mxu0 %v372
  %v829 = vpop.f32.mrb[0].mxu0
  %v830 = vadd.f32 %v194, %v829
  %v831 = vpop.f32.mrb[0].mxu0
  %v832 = vpop.f32.mrb[0].mxu0
  %v833 = vadd.f32 %v194, %v832
  %v834 = vpop.f32.mrb[0].mxu0
  %835 = vmatprep.mubr.bf16.mxu0 %v380
  %836 = vmatmul.mubr.bf16.gmra.mrb[0].mxu0 %v379
  %v837 = vpop.f32.mrb[0].mxu0
  %v838 = vadd.f32 %v194, %v837
  %v839 = vpop.f32.mrb[0].mxu0
  %v840 = vpop.f32.mrb[0].mxu0
  %v841 = vadd.f32 %v194, %v840
  %v842 = vpop.f32.mrb[0].mxu0
  %843 = vmatprep.mubr.bf16.mxu0 %v387
  %844 = vmatmul.mubr.bf16.gmra.mrb[0].mxu0 %v386
  %v845 = vpop.f32.mrb[0].mxu0
  %v846 = vadd.f32 %v194, %v845
  %v847 = vpop.f32.mrb[0].mxu0
  %v848 = vpop.f32.mrb[0].mxu0
  %v849 = vadd.f32 %v194, %v848
  %v850 = vpop.f32.mrb[0].mxu0
  %851 = vmatprep.mubr.bf16.mxu0 %v394
  %852 = vmatmul.mubr.bf16.gmra.mrb[0].mxu0 %v393
  %v853 = vpop.f32.mrb[0].mxu0
  %v854 = vadd.f32 %v194, %v853
  %v855 = vpop.f32.mrb[0].mxu0
  %v856 = vpop.f32.mrb[0].mxu0
  %v857 = vadd.f32 %v194, %v856
  %v858 = vpop.f32.mrb[0].mxu0
  %859 = vmatprep.mubr.bf16.mxu0 %v401
  %860 = vmatmul.mubr.bf16.gmra.mrb[0].mxu0 %v400
  %v861 = vpop.f32.mrb[0].mxu0
  %v862 = vadd.f32 %v194, %v861
  %v863 = vpop.f32.mrb[0].mxu0
  %v864 = vpop.f32.mrb[0].mxu0
  %v865 = vadd.f32 %v194, %v864
  %v866 = vpop.f32.mrb[0].mxu0
  %867 = vmatprep.mubr.bf16.mxu0 %v408
  %868 = vmatmul.mubr.bf16.gmra.mrb[0].mxu0 %v407
  %v869 = vpop.f32.mrb[0].mxu0
  %v870 = vadd.f32 %v194, %v869
  %v871 = vpop.f32.mrb[0].mxu0
  %v872 = vpop.f32.mrb[0].mxu0
  %v873 = vadd.f32 %v194, %v872
  %v874 = vpop.f32.mrb[0].mxu0
  %875 = vmatprep.mubr.bf16.mxu0 %v415
  %876 = vmatmul.mubr.bf16.gmra.mrb[0].mxu0 %v414
  %v877 = vpop.f32.mrb[0].mxu0
  %v878 = vadd.f32 %v194, %v877
  %v879 = vpop.f32.mrb[0].mxu0
  %v880 = vpop.f32.mrb[0].mxu0
  %v881 = vadd.f32 %v194, %v880
  %v882 = vpop.f32.mrb[0].mxu0
  %883 = vmatprep.mubr.bf16.mxu0 %v422
  %884 = vmatmul.mubr.bf16.gmra.mrb[0].mxu0 %v421
  %v885 = vpop.f32.mrb[0].mxu0
  %v886 = vadd.f32 %v194, %v885
  %v887 = vpop.f32.mrb[0].mxu0
  %v888 = vpop.f32.mrb[0].mxu0
  %v889 = vadd.f32 %v194, %v888
  %v890 = vpop.f32.mrb[0].mxu0
  %891 = vdwg.mxu0
  %892 = vmatprep.subr.bf16.mxu0 0
  %893 = vmatpush1.bf16.msra.mxu0 %v688
  %894 = vmatprep.subr.bf16.mxu0 0
  %895 = vmatpush1.bf16.msra.mxu0 %v689
  %896 = vmatprep.subr.bf16.mxu0 0
  %897 = vmatpush1.bf16.msra.mxu0 %v690
  %898 = vmatprep.subr.bf16.mxu0 0
  %899 = vmatpush1.bf16.msra.mxu0 %v691
  %900 = vmatprep.subr.bf16.mxu0 0
  %901 = vmatpush1.bf16.msra.mxu0 %v692
  %902 = vmatprep.subr.bf16.mxu0 0
  %903 = vmatpush1.bf16.msra.mxu0 %v693
  %904 = vmatprep.subr.bf16.mxu0 0
  %905 = vmatpush1.bf16.msra.mxu0 %v694
  %906 = vmatprep.subr.bf16.mxu0 0
  %907 = vmatpush1.bf16.msra.mxu0 %v695
  %908 = vmatprep.subr.bf16.mxu0 0
  %909 = vmatpush1.bf16.msra.mxu0 %v696
  %910 = vmatprep.subr.bf16.mxu0 0
  %911 = vmatpush1.bf16.msra.mxu0 %v697
  %912 = vmatprep.subr.bf16.mxu0 0
  %913 = vmatpush1.bf16.msra.mxu0 %v698
  %914 = vmatprep.subr.bf16.mxu0 0
  %915 = vmatpush1.bf16.msra.mxu0 %v699
  %916 = vmatprep.subr.bf16.mxu0 0
  %917 = vmatpush1.bf16.msra.mxu0 %v700
  %918 = vmatprep.subr.bf16.mxu0 0
  %919 = vmatpush1.bf16.msra.mxu0 %v701
  %920 = vmatprep.subr.bf16.mxu0 0
  %921 = vmatpush1.bf16.msra.mxu0 %v702
  %922 = vmatprep.subr.bf16.mxu0 0
  %923 = vmatpush1.bf16.msra.mxu0 %v703
  %924 = vmatprep.mubr.bf16.mxu0 %v375
  %925 = vmatmul.mubr.bf16.gmra.mrb[0].mxu0 %v374
  %v926 = vpop.f32.mrb[0].mxu0
  %v927 = vadd.f32 %v830, %v926
  %v928 = vpop.f32.mrb[0].mxu0
  %v929 = vpop.f32.mrb[0].mxu0
  %v930 = vadd.f32 %v833, %v929
  %v931 = vpop.f32.mrb[0].mxu0
  %932 = vmatprep.mubr.bf16.mxu0 %v382
  %933 = vmatmul.mubr.bf16.gmra.mrb[0].mxu0 %v381
  %v934 = vpop.f32.mrb[0].mxu0
  %v935 = vadd.f32 %v838, %v934
  %v936 = vpop.f32.mrb[0].mxu0
  %v937 = vpop.f32.mrb[0].mxu0
  %v938 = vadd.f32 %v841, %v937
  %v939 = vpop.f32.mrb[0].mxu0
  %940 = vmatprep.mubr.bf16.mxu0 %v389
  %941 = vmatmul.mubr.bf16.gmra.mrb[0].mxu0 %v388
  %v942 = vpop.f32.mrb[0].mxu0
  %v943 = vadd.f32 %v846, %v942
  %v944 = vpop.f32.mrb[0].mxu0
  %v945 = vpop.f32.mrb[0].mxu0
  %v946 = vadd.f32 %v849, %v945
  %v947 = vpop.f32.mrb[0].mxu0
  %948 = vmatprep.mubr.bf16.mxu0 %v396
  %949 = vmatmul.mubr.bf16.gmra.mrb[0].mxu0 %v395
  %v950 = vpop.f32.mrb[0].mxu0
  %v951 = vadd.f32 %v854, %v950
  %v952 = vpop.f32.mrb[0].mxu0
  %v953 = vpop.f32.mrb[0].mxu0
  %v954 = vadd.f32 %v857, %v953
  %v955 = vpop.f32.mrb[0].mxu0
  %956 = vmatprep.mubr.bf16.mxu0 %v403
  %957 = vmatmul.mubr.bf16.gmra.mrb[0].mxu0 %v402
  %v958 = vpop.f32.mrb[0].mxu0
  %v959 = vadd.f32 %v862, %v958
  %v960 = vpop.f32.mrb[0].mxu0
  %v961 = vpop.f32.mrb[0].mxu0
  %v962 = vadd.f32 %v865, %v961
  %v963 = vpop.f32.mrb[0].mxu0
  %964 = vmatprep.mubr.bf16.mxu0 %v410
  %965 = vmatmul.mubr.bf16.gmra.mrb[0].mxu0 %v409
  %v966 = vpop.f32.mrb[0].mxu0
  %v967 = vadd.f32 %v870, %v966
  %v968 = vpop.f32.mrb[0].mxu0
  %v969 = vpop.f32.mrb[0].mxu0
  %v970 = vadd.f32 %v873, %v969
  %v971 = vpop.f32.mrb[0].mxu0
  %972 = vmatprep.mubr.bf16.mxu0 %v417
  %973 = vmatmul.mubr.bf16.gmra.mrb[0].mxu0 %v416
  %v974 = vpop.f32.mrb[0].mxu0
  %v975 = vadd.f32 %v878, %v974
  %v976 = vpop.f32.mrb[0].mxu0
  %v977 = vpop.f32.mrb[0].mxu0
  %v978 = vadd.f32 %v881, %v977
  %v979 = vpop.f32.mrb[0].mxu0
  %980 = vmatprep.mubr.bf16.mxu0 %v424
  %981 = vmatmul.mubr.bf16.gmra.mrb[0].mxu0 %v423
  %v982 = vpop.f32.mrb[0].mxu0
  %v983 = vadd.f32 %v886, %v982
  %v984 = vpop.f32.mrb[0].mxu0
  %v985 = vpop.f32.mrb[0].mxu0
  %v986 = vadd.f32 %v889, %v985
  %v987 = vpop.f32.mrb[0].mxu0
  %988 = vdwg.mxu0
  %989 = vmatprep.subr.bf16.mxu0 0
  %990 = vmatpush1.bf16.msra.mxu0 %v704
  %991 = vmatprep.subr.bf16.mxu0 0
  %992 = vmatpush1.bf16.msra.mxu0 %v705
  %993 = vmatprep.subr.bf16.mxu0 0
  %994 = vmatpush1.bf16.msra.mxu0 %v706
  %995 = vmatprep.subr.bf16.mxu0 0
  %996 = vmatpush1.bf16.msra.mxu0 %v707
  %997 = vmatprep.subr.bf16.mxu0 0
  %998 = vmatpush1.bf16.msra.mxu0 %v708
  %999 = vmatprep.subr.bf16.mxu0 0
  %1000 = vmatpush1.bf16.msra.mxu0 %v709
  %1001 = vmatprep.subr.bf16.mxu0 0
  %1002 = vmatpush1.bf16.msra.mxu0 %v710
  %1003 = vmatprep.subr.bf16.mxu0 0
  %1004 = vmatpush1.bf16.msra.mxu0 %v711
  %1005 = vmatprep.subr.bf16.mxu0 0
  %1006 = vmatpush1.bf16.msra.mxu0 %v712
  %1007 = vmatprep.subr.bf16.mxu0 0
  %1008 = vmatpush1.bf16.msra.mxu0 %v713
  %1009 = vmatprep.subr.bf16.mxu0 0
  %1010 = vmatpush1.bf16.msra.mxu0 %v714
  %1011 = vmatprep.subr.bf16.mxu0 0
  %1012 = vmatpush1.bf16.msra.mxu0 %v715
  %1013 = vmatprep.subr.bf16.mxu0 0
  %1014 = vmatpush1.bf16.msra.mxu0 %v716
  %1015 = vmatprep.subr.bf16.mxu0 0
  %1016 = vmatpush1.bf16.msra.mxu0 %v717
  %1017 = vmatprep.subr.bf16.mxu0 0
  %1018 = vmatpush1.bf16.msra.mxu0 %v718
  %1019 = vmatprep.subr.bf16.mxu0 0
  %1020 = vmatpush1.bf16.msra.mxu0 %v719
  %1021 = vmatprep.mubr.bf16.mxu0 %v377
  %1022 = vmatmul.mubr.bf16.gmra.mrb[0].mxu0 %v376
  %v1023 = vpop.f32.mrb[0].mxu0
  %v1024 = vadd.f32 %v927, %v1023
  %v1025 = vpop.f32.mrb[0].mxu0
  %v1026 = vpop.f32.mrb[0].mxu0
  %v1027 = vadd.f32 %v930, %v1026
  %v1028 = vpop.f32.mrb[0].mxu0
  %1029 = vmatprep.mubr.bf16.mxu0 %v384
  %1030 = vmatmul.mubr.bf16.gmra.mrb[0].mxu0 %v383
  %v1031 = vpop.f32.mrb[0].mxu0
  %v1032 = vadd.f32 %v935, %v1031
  %v1033 = vpop.f32.mrb[0].mxu0
  %v1034 = vpop.f32.mrb[0].mxu0
  %v1035 = vadd.f32 %v938, %v1034
  %v1036 = vpop.f32.mrb[0].mxu0
  %1037 = vmatprep.mubr.bf16.mxu0 %v391
  %1038 = vmatmul.mubr.bf16.gmra.mrb[0].mxu0 %v390
  %v1039 = vpop.f32.mrb[0].mxu0
  %v1040 = vadd.f32 %v943, %v1039
  %v1041 = vpop.f32.mrb[0].mxu0
  %v1042 = vpop.f32.mrb[0].mxu0
  %v1043 = vadd.f32 %v946, %v1042
  %v1044 = vpop.f32.mrb[0].mxu0
  %1045 = vmatprep.mubr.bf16.mxu0 %v398
  %1046 = vmatmul.mubr.bf16.gmra.mrb[0].mxu0 %v397
  %v1047 = vpop.f32.mrb[0].mxu0
  %v1048 = vadd.f32 %v951, %v1047
  %v1049 = vpop.f32.mrb[0].mxu0
  %v1050 = vpop.f32.mrb[0].mxu0
  %v1051 = vadd.f32 %v954, %v1050
  %v1052 = vpop.f32.mrb[0].mxu0
  %1053 = vmatprep.mubr.bf16.mxu0 %v405
  %1054 = vmatmul.mubr.bf16.gmra.mrb[0].mxu0 %v404
  %v1055 = vpop.f32.mrb[0].mxu0
  %v1056 = vadd.f32 %v959, %v1055
  %v1057 = vpop.f32.mrb[0].mxu0
  %v1058 = vpop.f32.mrb[0].mxu0
  %v1059 = vadd.f32 %v962, %v1058
  %v1060 = vpop.f32.mrb[0].mxu0
  %1061 = vmatprep.mubr.bf16.mxu0 %v412
  %1062 = vmatmul.mubr.bf16.gmra.mrb[0].mxu0 %v411
  %v1063 = vpop.f32.mrb[0].mxu0
  %v1064 = vadd.f32 %v967, %v1063
  %v1065 = vpop.f32.mrb[0].mxu0
  %v1066 = vpop.f32.mrb[0].mxu0
  %v1067 = vadd.f32 %v970, %v1066
  %v1068 = vpop.f32.mrb[0].mxu0
  %1069 = vmatprep.mubr.bf16.mxu0 %v419
  %1070 = vmatmul.mubr.bf16.gmra.mrb[0].mxu0 %v418
  %v1071 = vpop.f32.mrb[0].mxu0
  %v1072 = vadd.f32 %v975, %v1071
  %v1073 = vpop.f32.mrb[0].mxu0
  %v1074 = vpop.f32.mrb[0].mxu0
  %v1075 = vadd.f32 %v978, %v1074
  %v1076 = vpop.f32.mrb[0].mxu0
  %1077 = vmatprep.mubr.bf16.mxu0 %v426
  %1078 = vmatmul.mubr.bf16.gmra.mrb[0].mxu0 %v425
  %v1079 = vpop.f32.mrb[0].mxu0
  %v1080 = vadd.f32 %v983, %v1079
  %v1081 = vpop.f32.mrb[0].mxu0
  %v1082 = vpop.f32.mrb[0].mxu0
  %v1083 = vadd.f32 %v986, %v1082
  %v1084 = vpop.f32.mrb[0].mxu0
  %1085 = vdwg.mxu0
  %1086 = vmatprep.subr.bf16.mxu0 0
  %1087 = vmatpush1.bf16.msra.mxu0 %v720
  %1088 = vmatprep.subr.bf16.mxu0 0
  %1089 = vmatpush1.bf16.msra.mxu0 0
  %1090 = vmatprep.subr.bf16.mxu0 0
  %1091 = vmatpush1.bf16.msra.mxu0 0
  %1092 = vmatprep.subr.bf16.mxu0 0
  %1093 = vmatpush1.bf16.msra.mxu0 0
  %1094 = vmatprep.subr.bf16.mxu0 0
  %1095 = vmatpush1.bf16.msra.mxu0 0
  %1096 = vmatprep.subr.bf16.mxu0 0
  %1097 = vmatpush1.bf16.msra.mxu0 0
  %1098 = vmatprep.subr.bf16.mxu0 0
  %1099 = vmatpush1.bf16.msra.mxu0 0
  %1100 = vmatprep.subr.bf16.mxu0 0
  %1101 = vmatpush1.bf16.msra.mxu0 0
  %1102 = vmatprep.subr.bf16.mxu0 0
  %1103 = vmatpush1.bf16.msra.mxu0 0
  %1104 = vmatprep.subr.bf16.mxu0 0
  %1105 = vmatpush1.bf16.msra.mxu0 0
  %1106 = vmatprep.subr.bf16.mxu0 0
  %1107 = vmatpush1.bf16.msra.mxu0 0
  %1108 = vmatprep.subr.bf16.mxu0 0
  %1109 = vmatpush1.bf16.msra.mxu0 0
  %1110 = vmatprep.subr.bf16.mxu0 0
  %1111 = vmatpush1.bf16.msra.mxu0 0
  %1112 = vmatprep.subr.bf16.mxu0 0
  %1113 = vmatpush1.bf16.msra.mxu0 0
  %1114 = vmatprep.subr.bf16.mxu0 0
  %1115 = vmatpush1.bf16.msra.mxu0 0
  %1116 = vmatprep.subr.bf16.mxu0 0
  %1117 = vmatpush1.bf16.msra.mxu0 0
  %1118 = vmatprep.mubr.bf16.mxu0 0
  %1119 = vmatmul.mubr.bf16.gmra.mrb[0].mxu0 %v772
  %v1120 = vpop.f32.mrb[0].mxu0
  %v1121 = vadd.f32 %v1024, %v1120
  %v1122 = vpop.f32.mrb[0].mxu0
  %v1123 = vpop.f32.mrb[0].mxu0
  %v1124 = vadd.f32 %v1027, %v1123
  %v1125 = vpop.f32.mrb[0].mxu0
  %1126 = vmatprep.mubr.bf16.mxu0 0
  %1127 = vmatmul.mubr.bf16.gmra.mrb[0].mxu0 %v775
  %v1128 = vpop.f32.mrb[0].mxu0
  %v1129 = vadd.f32 %v1032, %v1128
  %v1130 = vpop.f32.mrb[0].mxu0
  %v1131 = vpop.f32.mrb[0].mxu0
  %v1132 = vadd.f32 %v1035, %v1131
  %v1133 = vpop.f32.mrb[0].mxu0
  %1134 = vmatprep.mubr.bf16.mxu0 0
  %1135 = vmatmul.mubr.bf16.gmra.mrb[0].mxu0 %v778
  %v1136 = vpop.f32.mrb[0].mxu0
  %v1137 = vadd.f32 %v1040, %v1136
  %v1138 = vpop.f32.mrb[0].mxu0
  %v1139 = vpop.f32.mrb[0].mxu0
  %v1140 = vadd.f32 %v1043, %v1139
  %v1141 = vpop.f32.mrb[0].mxu0
  %1142 = vmatprep.mubr.bf16.mxu0 0
  %1143 = vmatmul.mubr.bf16.gmra.mrb[0].mxu0 %v781
  %v1144 = vpop.f32.mrb[0].mxu0
  %v1145 = vadd.f32 %v1048, %v1144
  %v1146 = vpop.f32.mrb[0].mxu0
  %v1147 = vpop.f32.mrb[0].mxu0
  %v1148 = vadd.f32 %v1051, %v1147
  %v1149 = vpop.f32.mrb[0].mxu0
  %1150 = vmatprep.mubr.bf16.mxu0 0
  %1151 = vmatmul.mubr.bf16.gmra.mrb[0].mxu0 %v784
  %v1152 = vpop.f32.mrb[0].mxu0
  %v1153 = vadd.f32 %v1056, %v1152
  %v1154 = vpop.f32.mrb[0].mxu0
  %v1155 = vpop.f32.mrb[0].mxu0
  %v1156 = vadd.f32 %v1059, %v1155
  %v1157 = vpop.f32.mrb[0].mxu0
  %1158 = vmatprep.mubr.bf16.mxu0 0
  %1159 = vmatmul.mubr.bf16.gmra.mrb[0].mxu0 %v787
  %v1160 = vpop.f32.mrb[0].mxu0
  %v1161 = vadd.f32 %v1064, %v1160
  %v1162 = vpop.f32.mrb[0].mxu0
  %v1163 = vpop.f32.mrb[0].mxu0
  %v1164 = vadd.f32 %v1067, %v1163
  %v1165 = vpop.f32.mrb[0].mxu0
  %1166 = vmatprep.mubr.bf16.mxu0 0
  %1167 = vmatmul.mubr.bf16.gmra.mrb[0].mxu0 %v790
  %v1168 = vpop.f32.mrb[0].mxu0
  %v1169 = vadd.f32 %v1072, %v1168
  %v1170 = vpop.f32.mrb[0].mxu0
  %v1171 = vpop.f32.mrb[0].mxu0
  %v1172 = vadd.f32 %v1075, %v1171
  %v1173 = vpop.f32.mrb[0].mxu0
  %1174 = vmatprep.mubr.bf16.mxu0 0
  %1175 = vmatmul.mubr.bf16.gmra.mrb[0].mxu0 %v793
  %v1176 = vpop.f32.mrb[0].mxu0
  %v1177 = vadd.f32 %v1080, %v1176
  %v1178 = vpop.f32.mrb[0].mxu0
  %v1179 = vpop.f32.mrb[0].mxu0
  %v1180 = vadd.f32 %v1083, %v1179
  %v1181 = vpop.f32.mrb[0].mxu0
  %1182 = vdwg.mxu0
  %v1183 = vmax.f32 %v1121, 0.0
  %v1184 = vmax.f32 %v1124, 0.0
  %v1185 = vmax.f32 %v1129, 0.0
  %v1186 = vmax.f32 %v1132, 0.0
  %v1187 = vmax.f32 %v1137, 0.0
  %v1188 = vmax.f32 %v1140, 0.0
  %v1189 = vmax.f32 %v1145, 0.0
  %v1190 = vmax.f32 %v1148, 0.0
  %v1191 = vmax.f32 %v1153, 0.0
  %v1192 = vmax.f32 %v1156, 0.0
  %v1193 = vmax.f32 %v1161, 0.0
  %v1194 = vmax.f32 %v1164, 0.0
  %v1195 = vmax.f32 %v1169, 0.0
  %v1196 = vmax.f32 %v1172, 0.0
  %v1197 = vmax.f32 %v1177, 0.0
  %v1198 = vmax.f32 %v1180, 0.0
  %v1199 = vpack.c.bf16 %v1184, %v1183
  %v1200 = vpack.c.bf16 %v1186, %v1185
  %v1201 = vpack.c.bf16 %v1188, %v1187
  %v1202 = vpack.c.bf16 %v1190, %v1189
  %v1203 = vpack.c.bf16 %v1192, %v1191
  %v1204 = vpack.c.bf16 %v1194, %v1193
  %v1205 = vpack.c.bf16 %v1196, %v1195
  %v1206 = vpack.c.bf16 %v1198, %v1197
  %v1207 = vld [vmem:[%s3] sm:$0xf]
  %v1208 = vld [vmem:[%s3 + $0x4] sm:$0xf]
  %v1209 = vld [vmem:[%s3 + $0x8] sm:$0xf]
  %v1210 = vld [vmem:[%s3 + $0xc] sm:$0xf]
  %v1211 = vld [vmem:[%s3 + $0x10] sm:$0xf]
  %v1212 = vld [vmem:[%s3 + $0x14] sm:$0xf]
  %v1213 = vld [vmem:[%s3 + $0x18] sm:$0xf]
  %v1214 = vld [vmem:[%s3 + $0x1c] sm:$0xf]
  %v1215 = vld [vmem:[%s3 + $0x20] sm:$0xf]
  %v1216 = vld [vmem:[%s3 + $0x24] sm:$0xf]
  %v1217 = vld [vmem:[%s3 + $0x28] sm:$0xf]
  %v1218 = vld [vmem:[%s3 + $0x2c] sm:$0xf]
  %v1219 = vld [vmem:[%s3 + $0x30] sm:$0xf]
  %v1220 = vld [vmem:[%s3 + $0x34] sm:$0xf]
  %v1221 = vld [vmem:[%s3 + $0x38] sm:$0xf]
  %v1222 = vld [vmem:[%s3 + $0x3c] sm:$0xf]
  %v1223 = vld [vmem:[%s4] sm:$0x1]
  %v1225 = vlaneseq
  %v1226 = vshrl.u32 %v1225, 7
  %v1227 = vsub.s32 0, %v1226
  %v1228 = vrot.slane %v1223, %v1227
  %v1246 = vunpack.c.l.b16 %v1207
  %v1247 = vunpack.c.l.b16 %v1208
  %v1248 = vunpack.c.l.b16 %v1209
  %v1249 = vunpack.c.l.b16 %v1210
  %v1250 = vunpack.c.l.b16 %v1211
  %v1251 = vunpack.c.l.b16 %v1212
  %v1252 = vunpack.c.l.b16 %v1213
  %v1253 = vunpack.c.l.b16 %v1214
  %v1254 = vunpack.c.l.b16 %v1215
  %v1255 = vunpack.c.l.b16 %v1216
  %v1256 = vunpack.c.l.b16 %v1217
  %v1257 = vunpack.c.l.b16 %v1218
  %v1258 = vunpack.c.l.b16 %v1219
  %v1259 = vunpack.c.l.b16 %v1220
  %v1260 = vunpack.c.l.b16 %v1221
  %v1261 = vunpack.c.l.b16 %v1222
  %v1262 = vpack.c.b16 %v1247, %v1246
  %v1263 = vpack.c.b16 %v1249, %v1248
  %v1264 = vpack.c.b16 %v1251, %v1250
  %v1265 = vpack.c.b16 %v1253, %v1252
  %v1266 = vpack.c.b16 %v1255, %v1254
  %v1267 = vpack.c.b16 %v1257, %v1256
  %v1268 = vpack.c.b16 %v1259, %v1258
  %v1269 = vpack.c.b16 %v1261, %v1260
  %1278 = vmatprep.subr.bf16.mxu0 0
  %1279 = vmatpush1.bf16.msra.mxu0 %v1262
  %1280 = vmatprep.subr.bf16.mxu0 0
  %1281 = vmatpush1.bf16.msra.mxu0 %v1263
  %1282 = vmatprep.subr.bf16.mxu0 0
  %1283 = vmatpush1.bf16.msra.mxu0 %v1264
  %1284 = vmatprep.subr.bf16.mxu0 0
  %1285 = vmatpush1.bf16.msra.mxu0 %v1265
  %1286 = vmatprep.subr.bf16.mxu0 0
  %1287 = vmatpush1.bf16.msra.mxu0 %v1266
  %1288 = vmatprep.subr.bf16.mxu0 0
  %1289 = vmatpush1.bf16.msra.mxu0 %v1267
  %1290 = vmatprep.subr.bf16.mxu0 0
  %1291 = vmatpush1.bf16.msra.mxu0 %v1268
  %1292 = vmatprep.subr.bf16.mxu0 0
  %1293 = vmatpush1.bf16.msra.mxu0 %v1269
  %1294 = vmatprep.subr.bf16.mxu0 0
  %1295 = vmatpush1.bf16.msra.mxu0 0
  %1296 = vmatprep.subr.bf16.mxu0 0
  %1297 = vmatpush1.bf16.msra.mxu0 0
  %1298 = vmatprep.subr.bf16.mxu0 0
  %1299 = vmatpush1.bf16.msra.mxu0 0
  %1300 = vmatprep.subr.bf16.mxu0 0
  %1301 = vmatpush1.bf16.msra.mxu0 0
  %1302 = vmatprep.subr.bf16.mxu0 0
  %1303 = vmatpush1.bf16.msra.mxu0 0
  %1304 = vmatprep.subr.bf16.mxu0 0
  %1305 = vmatpush1.bf16.msra.mxu0 0
  %1306 = vmatprep.subr.bf16.mxu0 0
  %1307 = vmatpush1.bf16.msra.mxu0 0
  %1308 = vmatprep.subr.bf16.mxu0 0
  %1309 = vmatpush1.bf16.msra.mxu0 0
  %1310 = vmatprep.mubr.bf16.mxu0 0
  %1311 = vmatmul.mubr.bf16.gmra.mrb[0].mxu0 %v1199
  %v1312 = vpop.f32.mrb[0].mxu0
  %v1313 = vadd.f32 %v1228, %v1312
  %v1314 = vpop.f32.mrb[0].mxu0
  %v1315 = vpop.f32.mrb[0].mxu0
  %v1316 = vadd.f32 %v1228, %v1315
  %v1317 = vpop.f32.mrb[0].mxu0
  %1318 = vmatprep.mubr.bf16.mxu0 0
  %1319 = vmatmul.mubr.bf16.gmra.mrb[0].mxu0 %v1200
  %v1320 = vpop.f32.mrb[0].mxu0
  %v1321 = vadd.f32 %v1228, %v1320
  %v1322 = vpop.f32.mrb[0].mxu0
  %v1323 = vpop.f32.mrb[0].mxu0
  %v1324 = vadd.f32 %v1228, %v1323
  %v1325 = vpop.f32.mrb[0].mxu0
  %1326 = vmatprep.mubr.bf16.mxu0 0
  %1327 = vmatmul.mubr.bf16.gmra.mrb[0].mxu0 %v1201
  %v1328 = vpop.f32.mrb[0].mxu0
  %v1329 = vadd.f32 %v1228, %v1328
  %v1330 = vpop.f32.mrb[0].mxu0
  %v1331 = vpop.f32.mrb[0].mxu0
  %v1332 = vadd.f32 %v1228, %v1331
  %v1333 = vpop.f32.mrb[0].mxu0
  %1334 = vmatprep.mubr.bf16.mxu0 0
  %1335 = vmatmul.mubr.bf16.gmra.mrb[0].mxu0 %v1202
  %v1336 = vpop.f32.mrb[0].mxu0
  %v1337 = vadd.f32 %v1228, %v1336
  %v1338 = vpop.f32.mrb[0].mxu0
  %v1339 = vpop.f32.mrb[0].mxu0
  %v1340 = vadd.f32 %v1228, %v1339
  %v1341 = vpop.f32.mrb[0].mxu0
  %1342 = vmatprep.mubr.bf16.mxu0 0
  %1343 = vmatmul.mubr.bf16.gmra.mrb[0].mxu0 %v1203
  %v1344 = vpop.f32.mrb[0].mxu0
  %v1345 = vadd.f32 %v1228, %v1344
  %v1346 = vpop.f32.mrb[0].mxu0
  %v1347 = vpop.f32.mrb[0].mxu0
  %v1348 = vadd.f32 %v1228, %v1347
  %v1349 = vpop.f32.mrb[0].mxu0
  %1350 = vmatprep.mubr.bf16.mxu0 0
  %1351 = vmatmul.mubr.bf16.gmra.mrb[0].mxu0 %v1204
  %v1352 = vpop.f32.mrb[0].mxu0
  %v1353 = vadd.f32 %v1228, %v1352
  %v1354 = vpop.f32.mrb[0].mxu0
  %v1355 = vpop.f32.mrb[0].mxu0
  %v1356 = vadd.f32 %v1228, %v1355
  %v1357 = vpop.f32.mrb[0].mxu0
  %1358 = vmatprep.mubr.bf16.mxu0 0
  %1359 = vmatmul.mubr.bf16.gmra.mrb[0].mxu0 %v1205
  %v1360 = vpop.f32.mrb[0].mxu0
  %v1361 = vadd.f32 %v1228, %v1360
  %v1362 = vpop.f32.mrb[0].mxu0
  %v1363 = vpop.f32.mrb[0].mxu0
  %v1364 = vadd.f32 %v1228, %v1363
  %v1365 = vpop.f32.mrb[0].mxu0
  %1366 = vmatprep.mubr.bf16.mxu0 0
  %1367 = vmatmul.mubr.bf16.gmra.mrb[0].mxu0 %v1206
  %v1368 = vpop.f32.mrb[0].mxu0
  %v1369 = vadd.f32 %v1228, %v1368
  %v1370 = vpop.f32.mrb[0].mxu0
  %v1371 = vpop.f32.mrb[0].mxu0
  %v1372 = vadd.f32 %v1228, %v1371
  %v1373 = vpop.f32.mrb[0].mxu0
  %1374 = vdwg.mxu0
  %v1375 = vmax.f32 %v1313, 0.0
  %v1376 = vmax.f32 %v1316, 0.0
  %v1377 = vmax.f32 %v1321, 0.0
  %v1378 = vmax.f32 %v1324, 0.0
  %v1379 = vmax.f32 %v1329, 0.0
  %v1380 = vmax.f32 %v1332, 0.0
  %v1381 = vmax.f32 %v1337, 0.0
  %v1382 = vmax.f32 %v1340, 0.0
  %v1383 = vmax.f32 %v1345, 0.0
  %v1384 = vmax.f32 %v1348, 0.0
  %v1385 = vmax.f32 %v1353, 0.0
  %v1386 = vmax.f32 %v1356, 0.0
  %v1387 = vmax.f32 %v1361, 0.0
  %v1388 = vmax.f32 %v1364, 0.0
  %v1389 = vmax.f32 %v1369, 0.0
  %v1390 = vmax.f32 %v1372, 0.0
  %v1391 = vpack.c.bf16 %v1376, %v1375
  %v1392 = vpack.c.bf16 %v1378, %v1377
  %v1393 = vpack.c.bf16 %v1380, %v1379
  %v1394 = vpack.c.bf16 %v1382, %v1381
  %v1395 = vpack.c.bf16 %v1384, %v1383
  %v1396 = vpack.c.bf16 %v1386, %v1385
  %v1397 = vpack.c.bf16 %v1388, %v1387
  %v1398 = vpack.c.bf16 %v1390, %v1389
  %v1399 = vld [vmem:[%s5] sm:$0xf]
  %v1400 = vld [vmem:[%s5 + $0x4] sm:$0xf]
  %v1401 = vld [vmem:[%s5 + $0x8] sm:$0xf]
  %v1402 = vld [vmem:[%s5 + $0xc] sm:$0xf]
  %v1403 = vld [vmem:[%s5 + $0x10] sm:$0xf]
  %v1404 = vld [vmem:[%s5 + $0x14] sm:$0xf]
  %v1405 = vld [vmem:[%s5 + $0x18] sm:$0xf]
  %v1406 = vld [vmem:[%s5 + $0x1c] sm:$0xf]
  %v1407 = vld [vmem:[%s5 + $0x20] sm:$0xf]
  %v1408 = vld [vmem:[%s5 + $0x24] sm:$0xf]
  %v1409 = vld [vmem:[%s5 + $0x28] sm:$0xf]
  %v1410 = vld [vmem:[%s5 + $0x2c] sm:$0xf]
  %v1411 = vld [vmem:[%s5 + $0x30] sm:$0xf]
  %v1412 = vld [vmem:[%s5 + $0x34] sm:$0xf]
  %v1413 = vld [vmem:[%s5 + $0x38] sm:$0xf]
  %v1414 = vld [vmem:[%s5 + $0x3c] sm:$0xf]
  %v1415 = vld [vmem:[%s6] sm:$0x1]
  %v1417 = vlaneseq
  %v1418 = vshrl.u32 %v1417, 7
  %v1419 = vsub.s32 0, %v1418
  %v1420 = vrot.slane %v1415, %v1419
  %v1438 = vunpack.c.l.b16 %v1399
  %v1439 = vunpack.c.l.b16 %v1400
  %v1440 = vunpack.c.l.b16 %v1401
  %v1441 = vunpack.c.l.b16 %v1402
  %v1442 = vunpack.c.l.b16 %v1403
  %v1443 = vunpack.c.l.b16 %v1404
  %v1444 = vunpack.c.l.b16 %v1405
  %v1445 = vunpack.c.l.b16 %v1406
  %v1446 = vunpack.c.l.b16 %v1407
  %v1447 = vunpack.c.l.b16 %v1408
  %v1448 = vunpack.c.l.b16 %v1409
  %v1449 = vunpack.c.l.b16 %v1410
  %v1450 = vunpack.c.l.b16 %v1411
  %v1451 = vunpack.c.l.b16 %v1412
  %v1452 = vunpack.c.l.b16 %v1413
  %v1453 = vunpack.c.l.b16 %v1414
  %v1454 = vpack.c.b16 %v1439, %v1438
  %v1455 = vpack.c.b16 %v1441, %v1440
  %v1456 = vpack.c.b16 %v1443, %v1442
  %v1457 = vpack.c.b16 %v1445, %v1444
  %v1458 = vpack.c.b16 %v1447, %v1446
  %v1459 = vpack.c.b16 %v1449, %v1448
  %v1460 = vpack.c.b16 %v1451, %v1450
  %v1461 = vpack.c.b16 %v1453, %v1452
  %1470 = vmatprep.subr.bf16.mxu0 0
  %1471 = vmatpush1.bf16.msra.mxu0 %v1454
  %1472 = vmatprep.subr.bf16.mxu0 0
  %1473 = vmatpush1.bf16.msra.mxu0 %v1455
  %1474 = vmatprep.subr.bf16.mxu0 0
  %1475 = vmatpush1.bf16.msra.mxu0 %v1456
  %1476 = vmatprep.subr.bf16.mxu0 0
  %1477 = vmatpush1.bf16.msra.mxu0 %v1457
  %1478 = vmatprep.subr.bf16.mxu0 0
  %1479 = vmatpush1.bf16.msra.mxu0 %v1458
  %1480 = vmatprep.subr.bf16.mxu0 0
  %1481 = vmatpush1.bf16.msra.mxu0 %v1459
  %1482 = vmatprep.subr.bf16.mxu0 0
  %1483 = vmatpush1.bf16.msra.mxu0 %v1460
  %1484 = vmatprep.subr.bf16.mxu0 0
  %1485 = vmatpush1.bf16.msra.mxu0 %v1461
  %1486 = vmatprep.subr.bf16.mxu0 0
  %1487 = vmatpush1.bf16.msra.mxu0 0
  %1488 = vmatprep.subr.bf16.mxu0 0
  %1489 = vmatpush1.bf16.msra.mxu0 0
  %1490 = vmatprep.subr.bf16.mxu0 0
  %1491 = vmatpush1.bf16.msra.mxu0 0
  %1492 = vmatprep.subr.bf16.mxu0 0
  %1493 = vmatpush1.bf16.msra.mxu0 0
  %1494 = vmatprep.subr.bf16.mxu0 0
  %1495 = vmatpush1.bf16.msra.mxu0 0
  %1496 = vmatprep.subr.bf16.mxu0 0
  %1497 = vmatpush1.bf16.msra.mxu0 0
  %1498 = vmatprep.subr.bf16.mxu0 0
  %1499 = vmatpush1.bf16.msra.mxu0 0
  %1500 = vmatprep.subr.bf16.mxu0 0
  %1501 = vmatpush1.bf16.msra.mxu0 0
  %1502 = vmatprep.mubr.bf16.mxu0 0
  %1503 = vmatmul.mubr.bf16.gmra.mrb[0].mxu0 %v1391
  %v1504 = vpop.f32.mrb[0].mxu0
  %v1505 = vadd.f32 %v1420, %v1504
  %v1506 = vpop.f32.mrb[0].mxu0
  %v1507 = vpop.f32.mrb[0].mxu0
  %v1508 = vadd.f32 %v1420, %v1507
  %v1509 = vpop.f32.mrb[0].mxu0
  %1510 = vmatprep.mubr.bf16.mxu0 0
  %1511 = vmatmul.mubr.bf16.gmra.mrb[0].mxu0 %v1392
  %v1512 = vpop.f32.mrb[0].mxu0
  %v1513 = vadd.f32 %v1420, %v1512
  %v1514 = vpop.f32.mrb[0].mxu0
  %v1515 = vpop.f32.mrb[0].mxu0
  %v1516 = vadd.f32 %v1420, %v1515
  %v1517 = vpop.f32.mrb[0].mxu0
  %1518 = vmatprep.mubr.bf16.mxu0 0
  %1519 = vmatmul.mubr.bf16.gmra.mrb[0].mxu0 %v1393
  %v1520 = vpop.f32.mrb[0].mxu0
  %v1521 = vadd.f32 %v1420, %v1520
  %v1522 = vpop.f32.mrb[0].mxu0
  %v1523 = vpop.f32.mrb[0].mxu0
  %v1524 = vadd.f32 %v1420, %v1523
  %v1525 = vpop.f32.mrb[0].mxu0
  %1526 = vmatprep.mubr.bf16.mxu0 0
  %1527 = vmatmul.mubr.bf16.gmra.mrb[0].mxu0 %v1394
  %v1528 = vpop.f32.mrb[0].mxu0
  %v1529 = vadd.f32 %v1420, %v1528
  %v1530 = vpop.f32.mrb[0].mxu0
  %v1531 = vpop.f32.mrb[0].mxu0
  %v1532 = vadd.f32 %v1420, %v1531
  %v1533 = vpop.f32.mrb[0].mxu0
  %1534 = vmatprep.mubr.bf16.mxu0 0
  %1535 = vmatmul.mubr.bf16.gmra.mrb[0].mxu0 %v1395
  %v1536 = vpop.f32.mrb[0].mxu0
  %v1537 = vadd.f32 %v1420, %v1536
  %v1538 = vpop.f32.mrb[0].mxu0
  %v1539 = vpop.f32.mrb[0].mxu0
  %v1540 = vadd.f32 %v1420, %v1539
  %v1541 = vpop.f32.mrb[0].mxu0
  %1542 = vmatprep.mubr.bf16.mxu0 0
  %1543 = vmatmul.mubr.bf16.gmra.mrb[0].mxu0 %v1396
  %v1544 = vpop.f32.mrb[0].mxu0
  %v1545 = vadd.f32 %v1420, %v1544
  %v1546 = vpop.f32.mrb[0].mxu0
  %v1547 = vpop.f32.mrb[0].mxu0
  %v1548 = vadd.f32 %v1420, %v1547
  %v1549 = vpop.f32.mrb[0].mxu0
  %1550 = vmatprep.mubr.bf16.mxu0 0
  %1551 = vmatmul.mubr.bf16.gmra.mrb[0].mxu0 %v1397
  %v1552 = vpop.f32.mrb[0].mxu0
  %v1553 = vadd.f32 %v1420, %v1552
  %v1554 = vpop.f32.mrb[0].mxu0
  %v1555 = vpop.f32.mrb[0].mxu0
  %v1556 = vadd.f32 %v1420, %v1555
  %v1557 = vpop.f32.mrb[0].mxu0
  %1558 = vmatprep.mubr.bf16.mxu0 0
  %1559 = vmatmul.mubr.bf16.gmra.mrb[0].mxu0 %v1398
  %v1560 = vpop.f32.mrb[0].mxu0
  %v1561 = vadd.f32 %v1420, %v1560
  %v1562 = vpop.f32.mrb[0].mxu0
  %v1563 = vpop.f32.mrb[0].mxu0
  %v1564 = vadd.f32 %v1420, %v1563
  %v1565 = vpop.f32.mrb[0].mxu0
  %1566 = vdwg.mxu0
  %1567 = vst [vmem:[%s7] sm:$0xff] %v1505
  %1568 = vst [vmem:[%s7 + $0x8] sm:$0xff] %v1508
  %1569 = vst [vmem:[%s7 + $0x10] sm:$0xff] %v1513
  %1570 = vst [vmem:[%s7 + $0x18] sm:$0xff] %v1516
  %1571 = vst [vmem:[%s7 + $0x20] sm:$0xff] %v1521
  %1572 = vst [vmem:[%s7 + $0x28] sm:$0xff] %v1524
  %1573 = vst [vmem:[%s7 + $0x30] sm:$0xff] %v1529
  %1574 = vst [vmem:[%s7 + $0x38] sm:$0xff] %v1532
  %1575 = vst [vmem:[%s7 + $0x40] sm:$0xff] %v1537
  %1576 = vst [vmem:[%s7 + $0x48] sm:$0xff] %v1540
  %1577 = vst [vmem:[%s7 + $0x50] sm:$0xff] %v1545
  %1578 = vst [vmem:[%s7 + $0x58] sm:$0xff] %v1548
  %1579 = vst [vmem:[%s7 + $0x60] sm:$0xff] %v1553
  %1580 = vst [vmem:[%s7 + $0x68] sm:$0xff] %v1556
  %1581 = vst [vmem:[%s7 + $0x70] sm:$0xff] %v1561
  %1582 = vst [vmem:[%s7 + $0x78] sm:$0xff] %v1564
  // Predicated region
  $region30: #{densenet_fbm_forward.1} parent=0 // pred_check
    _
  $region31: #{densenet_fbm_forward.1} parent=0 // pred_check_branch
    %1584 = sbr.rel (0) target = $region33
  $region32: #{densenet_fbm_forward.1} parent=0 // pred_region
    _
  $region33: #{densenet_fbm_forward.1} parent=0 // pred_fallthru
    _
  // Predicated region
  $region34: #{densenet_fbm_forward.1} parent=0 // pred_check
    _
  $region35: #{densenet_fbm_forward.1} parent=0 // pred_check_branch
    %1586 = sbr.rel (0) target = $region37
  $region36: #{densenet_fbm_forward.1} parent=0 // pred_region
    _
  $region37: #{densenet_fbm_forward.1} parent=0 // pred_fallthru
    _

</llo_original>
